<compile_context>
chip_gen: v7x
topology: tpu7x:2x2x1
jax: 0.10.0
libtpu: 0.0.40
codegen_flags: <defaults>
</compile_context>

<pallas_src>
import functools

import jax
import jax.numpy as jnp
from jax.experimental import pallas as pl
from jax.experimental.pallas import tpu as pltpu

BN_EPS = 1e-5


def _round_up(n, m):
    return (n + m - 1) // m * m


def _pick_tm(M, tk, Cp, *, tm_max=512, vmem_budget=12 * 1024 * 1024):
    """Largest M-tile (multiple of 8) whose VMEM footprint fits the budget."""
    tm = min(_round_up(M, 8), _round_up(tm_max, 8))
    while tm > 8:
        usage = (2 * tm * tk * 2      # bf16 patch block, double-buffered
                 + 2 * tm * Cp * 4    # f32 conv output block, double-buffered
                 + 2 * tk * Cp * 2    # bf16 weight slab, double-buffered
                 + 2 * 8 * Cp * 4)    # per-tile stats
        if usage <= vmem_budget:
            break
        tm = _round_up(max(tm // 2, 8), 8)
    return max(tm, 8)


def _conv_stats_kernel(p_ref, w_ref, out_ref, stats_ref, *, fuse_relu):
    """One (tm, tk) x (tk, Cp) MXU step, accumulating into the resident
    f32 output block; emits per-channel sum / sum-of-squares on the last
    contraction step (and optionally fuses ReLU when there is no BN)."""
    k = pl.program_id(1)
    prod = jnp.dot(p_ref[...], w_ref[...], preferred_element_type=jnp.float32)

    @pl.when(k == 0)
    def _():
        out_ref[...] = prod

    @pl.when(k > 0)
    def _():
        out_ref[...] += prod

    @pl.when(k == pl.num_programs(1) - 1)
    def _():
        h = out_ref[...]
        # Partial BN stats for this M tile (zero-padded rows contribute 0).
        s1 = jnp.sum(h, axis=0, keepdims=True)
        s2 = jnp.sum(h * h, axis=0, keepdims=True)
        pad = jnp.zeros((6, h.shape[1]), jnp.float32)
        stats_ref[...] = jnp.concatenate([s1, s2, pad], axis=0)
        if fuse_relu:
            out_ref[...] = jnp.maximum(h, 0.0)


def _bn_relu_kernel(h_ref, s_ref, t_ref, o_ref, *, use_relu):
    """Streaming per-channel scale/shift (+ ReLU) over one M tile."""
    y = h_ref[...] * s_ref[...] + t_ref[...]
    if use_relu:
        y = jnp.maximum(y, 0.0)
    o_ref[...] = y.astype(o_ref.dtype)


def basic_conv_forward(x, w, gamma=None, beta=None, *, stride=1, padding=0,
                       dilation=1, relu=True, bn=True, tm_max=512):
    """BasicConv forward: Conv2d(bias=False) -> BatchNorm2d -> ReLU.

    x:     (B, C_in, H, W) NCHW float32
    w:     (C_out, C_in, KH, KW) PyTorch conv weight layout
    gamma, beta: (C_out,) BN affine parameters (ignored if bn=False)
    Returns (B, C_out, H_out, W_out) float32.
    """
    B, C_in, H, W = x.shape
    C_out, C_in_w, KH, KW = w.shape
    assert C_in_w == C_in, "groups != 1 not supported"
    H_out = (H + 2 * padding - dilation * (KH - 1) - 1) // stride + 1
    W_out = (W + 2 * padding - dilation * (KW - 1) - 1) // stride + 1
    M = B * H_out * W_out
    Kdim = KH * KW * C_in

    # ---- im2col: wrapper-side strided slicing, pre-cast to bf16 so the
    # materialized patch tensor (KH*KW x the input) costs half the HBM bytes.
    x_nhwc = jnp.transpose(x, (0, 2, 3, 1)).astype(jnp.bfloat16)
    x_pad = jnp.pad(x_nhwc,
                    ((0, 0), (padding, padding), (padding, padding), (0, 0)))
    taps = []
    for kh in range(KH):
        for kw in range(KW):
            h0, w0 = kh * dilation, kw * dilation
            taps.append(x_pad[:, h0:h0 + (H_out - 1) * stride + 1:stride,
                                 w0:w0 + (W_out - 1) * stride + 1:stride, :])
    patches = jnp.concatenate(taps, axis=-1).reshape(M, Kdim)

    # Weight (C_out, C_in, KH, KW) -> (KH, KW, C_in, C_out) -> (Kdim, C_out):
    # same (kh, kw, c_in) ordering as the patch taps above.
    w_flat = jnp.transpose(w, (2, 3, 1, 0)).reshape(Kdim, C_out)

    # ---- tiling: lane-dense padded C_out (un-tiled / resident), tiled M,
    # contraction tiled only when it does not fit comfortably in VMEM.
    Cp = _round_up(C_out, 128)
    Kp128 = _round_up(Kdim, 128)
    tk = Kp128 if Kp128 <= 1024 else 512
    Kp = _round_up(Kdim, tk)
    tm = _pick_tm(M, tk, Cp, tm_max=tm_max)
    Mp = _round_up(M, tm)
    num_mt, num_kt = Mp // tm, Kp // tk

    patches = jnp.pad(patches, ((0, Mp - M), (0, Kp - Kdim)))      # bf16
    w_flat = jnp.pad(w_flat, ((0, Kp - Kdim), (0, Cp - C_out))).astype(jnp.bfloat16)

    fuse_relu = relu and not bn
    conv_kernel = functools.partial(_conv_stats_kernel, fuse_relu=fuse_relu)

    conv, stats = pl.pallas_call(
        conv_kernel,
        out_shape=(jax.ShapeDtypeStruct((Mp, Cp), jnp.float32),
                   jax.ShapeDtypeStruct((num_mt * 8, Cp), jnp.float32)),
        grid_spec=pltpu.PrefetchScalarGridSpec(
            num_scalar_prefetch=0,
            grid=(num_mt, num_kt),
            in_specs=[
                # im2col patches: read exactly once (C_out not tiled).
                pl.BlockSpec((tm, tk), lambda i, k: (i, k)),
                # weight slab: full C_out width resident per block.
                pl.BlockSpec((tk, Cp), lambda i, k: (k, 0)),
            ],
            out_specs=(
                # conv output: resident across the contraction axis.
                pl.BlockSpec((tm, Cp), lambda i, k: (i, 0)),
                # per-M-tile partial BN stats (rows 0/1 = sum / sumsq).
                pl.BlockSpec((8, Cp), lambda i, k: (i, 0)),
            ),
        ),
        compiler_params=pltpu.CompilerParams(
            dimension_semantics=("parallel", "arbitrary"),
            vmem_limit_bytes=32 * 1024 * 1024),
    )(patches, w_flat)

    if bn:
        # Reduce partial stats -> fused per-channel scale/shift (tiny).
        # Zero-padded M rows contribute 0 to both sums, so dividing by the
        # true M gives exact training-mode batch statistics.
        stats = stats.reshape(num_mt, 8, Cp)
        ch_sum = jnp.sum(stats[:, 0, :], axis=0)
        ch_sq = jnp.sum(stats[:, 1, :], axis=0)
        mean = ch_sum / M
        # E[x^2]-E[x]^2 is cancellation-prone; clamp tiny negatives.
        var = jnp.maximum(ch_sq / M - mean * mean, 0.0)
        gamma_p = jnp.pad(gamma.astype(jnp.float32), (0, Cp - C_out),
                          constant_values=1.0)
        beta_p = jnp.pad(beta.astype(jnp.float32), (0, Cp - C_out))
        scale = gamma_p * jax.lax.rsqrt(var + BN_EPS)
        shift = beta_p - mean * scale

        y = pl.pallas_call(
            functools.partial(_bn_relu_kernel, use_relu=relu),
            out_shape=jax.ShapeDtypeStruct((Mp, Cp), jnp.float32),
            grid_spec=pltpu.PrefetchScalarGridSpec(
                num_scalar_prefetch=0,
                grid=(num_mt,),
                in_specs=[
                    pl.BlockSpec((tm, Cp), lambda i: (i, 0)),
                    pl.BlockSpec((1, Cp), lambda i: (0, 0)),
                    pl.BlockSpec((1, Cp), lambda i: (0, 0)),
                ],
                out_specs=pl.BlockSpec((tm, Cp), lambda i: (i, 0)),
            ),
            compiler_params=pltpu.CompilerParams(
                dimension_semantics=("parallel",),
                vmem_limit_bytes=32 * 1024 * 1024),
        )(conv, scale.reshape(1, Cp), shift.reshape(1, Cp))
    else:
        y = conv  # ReLU (if requested) already fused into pass 1.

    y = y[:M, :C_out].reshape(B, H_out, W_out, C_out)
    return jnp.transpose(y, (0, 3, 1, 2))  # back to NCHW


def _reference(x, w, gamma, beta, *, stride=1, padding=0, dilation=1,
               relu=True, bn=True):
    y = jax.lax.conv_general_dilated(
        x, w, window_strides=(stride, stride),
        padding=[(padding, padding), (padding, padding)],
        rhs_dilation=(dilation, dilation),
        dimension_numbers=("NCHW", "OIHW", "NCHW"))
    if bn:
        mu = jnp.mean(y, axis=(0, 2, 3), keepdims=True)
        var = jnp.mean((y - mu) ** 2, axis=(0, 2, 3), keepdims=True)
        y = (y - mu) * jax.lax.rsqrt(var + BN_EPS)
        y = y * gamma.reshape(1, -1, 1, 1) + beta.reshape(1, -1, 1, 1)
    if relu:
        y = jnp.maximum(y, 0.0)
    return y


if __name__ == "__main__":
    B, C_IN, H, W = 2, 4, 16, 16
    C_OUT, K, STRIDE, PAD = 32, 3, 1, 1

    key = jax.random.PRNGKey(0)
    kx, kw, kg, kb = jax.random.split(key, 4)
    x = jax.random.normal(kx, (B, C_IN, H, W), jnp.float32)
    w = jax.random.normal(kw, (C_OUT, C_IN, K, K), jnp.float32) / jnp.sqrt(
        float(C_IN * K * K))
    gamma = 1.0 + 0.1 * jax.random.normal(kg, (C_OUT,), jnp.float32)
    beta = 0.1 * jax.random.normal(kb, (C_OUT,), jnp.float32)

    y = basic_conv_forward(x, w, gamma, beta, stride=STRIDE, padding=PAD,
                           dilation=1, relu=True, bn=True)
    y = jax.block_until_ready(y)

    y_ref = _reference(x, w, gamma, beta, stride=STRIDE, padding=PAD,
                       dilation=1, relu=True, bn=True)
    assert y.shape == y_ref.shape == (B, C_OUT, H, W)
    max_err = float(jnp.max(jnp.abs(y - y_ref)))
    assert jnp.allclose(y, y_ref, atol=5e-2, rtol=5e-2), max_err

    print("KERNEL_OK")
</pallas_src>

<mosaic_0001>
module attributes {stable_mosaic.version = 11 : i64} {
  func.func @_conv_stats_kernel(%arg0: i32, %arg1: i32, %arg2: memref<512x128xbf16, #tpu.memory_space<vmem>>, %arg3: memref<128x128xbf16, #tpu.memory_space<vmem>>, %arg4: memref<512x128xf32, #tpu.memory_space<vmem>>, %arg5: memref<8x128xf32, #tpu.memory_space<vmem>>) attributes {dimension_semantics = [#tpu.dimension_semantics<parallel>, #tpu.dimension_semantics<arbitrary>], iteration_bounds = array<i64: 1, 1>, scalar_prefetch = 0 : i64, scratch_operands = 0 : i64, tpu.core_type = #tpu.core_type<tc>, window_params = [{transform_indices = @transform_0, window_bounds = array<i64: 512, 128>}, {transform_indices = @transform_1, window_bounds = array<i64: 128, 128>}, {transform_indices = @transform_2, window_bounds = array<i64: 512, 128>}, {transform_indices = @transform_3, window_bounds = array<i64: 8, 128>}]} {
    %c0 = arith.constant 0 : index
    %c0_0 = arith.constant 0 : index
    %0 = vector.load %arg2[%c0, %c0_0] : memref<512x128xbf16, #tpu.memory_space<vmem>>, vector<512x128xbf16>
    %c0_1 = arith.constant 0 : index
    %c0_2 = arith.constant 0 : index
    %1 = vector.load %arg3[%c0_1, %c0_2] : memref<128x128xbf16, #tpu.memory_space<vmem>>, vector<128x128xbf16>
    %cst = arith.constant dense<0.000000e+00> : vector<512x128xf32>
    %2 = tpu.matmul %0, %1, %cst {dimension_numbers = #tpu.dot_dimension_numbers<[1], [0], [0], [1], [0, 0, 1, 1], [], []>} : vector<512x128xbf16>, vector<128x128xbf16>, vector<512x128xf32> -> vector<512x128xf32>
    %c0_i32 = arith.constant 0 : i32
    %3 = arith.cmpi eq, %arg1, %c0_i32 : i32
    %4 = arith.extui %3 : i1 to i32
    %c0_i32_3 = arith.constant 0 : i32
    %5 = arith.cmpi ne, %4, %c0_i32_3 : i32
    scf.if %5 {
      %c0_8 = arith.constant 0 : index
      %c0_9 = arith.constant 0 : index
      %12 = vector.load %arg4[%c0_8, %c0_9] : memref<512x128xf32, #tpu.memory_space<vmem>>, vector<512x128xf32>
      tpu.vector_store %arg4[%c0_8, %c0_9], %2 {strides = array<i32>} : memref<512x128xf32, #tpu.memory_space<vmem>>, vector<512x128xf32>,
    } else {
    }
    %c0_i32_4 = arith.constant 0 : i32
    %6 = arith.cmpi sgt, %arg1, %c0_i32_4 : i32
    %7 = arith.extui %6 : i1 to i32
    %c0_i32_5 = arith.constant 0 : i32
    %8 = arith.cmpi ne, %7, %c0_i32_5 : i32
    scf.if %8 {
      %c0_8 = arith.constant 0 : index
      %c0_9 = arith.constant 0 : index
      %12 = vector.load %arg4[%c0_8, %c0_9] : memref<512x128xf32, #tpu.memory_space<vmem>>, vector<512x128xf32>
      %13 = arith.addf %12, %2 : vector<512x128xf32>
      %c0_10 = arith.constant 0 : index
      %c0_11 = arith.constant 0 : index
      %14 = vector.load %arg4[%c0_10, %c0_11] : memref<512x128xf32, #tpu.memory_space<vmem>>, vector<512x128xf32>
      tpu.vector_store %arg4[%c0_10, %c0_11], %13 {strides = array<i32>} : memref<512x128xf32, #tpu.memory_space<vmem>>, vector<512x128xf32>,
    } else {
    }
    %c0_i32_6 = arith.constant 0 : i32
    %9 = arith.cmpi eq, %arg1, %c0_i32_6 : i32
    %10 = arith.extui %9 : i1 to i32
    %c0_i32_7 = arith.constant 0 : i32
    %11 = arith.cmpi ne, %10, %c0_i32_7 : i32
    scf.if %11 {
      %c0_8 = arith.constant 0 : index
      %c0_9 = arith.constant 0 : index
      %12 = vector.load %arg4[%c0_8, %c0_9] : memref<512x128xf32, #tpu.memory_space<vmem>>, vector<512x128xf32>
      %cst_10 = arith.constant dense<0.000000e+00> : vector<128xf32>
      %13 = vector.multi_reduction <add>, %12, %cst_10 [0] : vector<512x128xf32> to vector<128xf32>
      %14 = vector.shape_cast %13 : vector<128xf32> to vector<1x128xf32>
      %15 = arith.mulf %12, %12 : vector<512x128xf32>
      %cst_11 = arith.constant dense<0.000000e+00> : vector<128xf32>
      %16 = vector.multi_reduction <add>, %15, %cst_11 [0] : vector<512x128xf32> to vector<128xf32>
      %17 = vector.shape_cast %16 : vector<128xf32> to vector<1x128xf32>
      %cst_12 = arith.constant 0.000000e+00 : f32
      %18 = vector.broadcast %cst_12 : f32 to vector<6x128xf32>
      %19 = tpu.concatenate %14, %17, %18 in 0 : vector<1x128xf32>, vector<1x128xf32>, vector<6x128xf32> -> vector<8x128xf32>
      %c0_13 = arith.constant 0 : index
      %c0_14 = arith.constant 0 : index
      %20 = vector.load %arg5[%c0_13, %c0_14] : memref<8x128xf32, #tpu.memory_space<vmem>>, vector<8x128xf32>
      tpu.vector_store %arg5[%c0_13, %c0_14], %19 {strides = array<i32>} : memref<8x128xf32, #tpu.memory_space<vmem>>, vector<8x128xf32>,
    } else {
    }
    return
  }
  func.func @transform_0(%arg0: i32, %arg1: i32) -> (i32, i32) {
    %c0_i32 = arith.constant 0 : i32
    return %arg0, %arg1 : i32, i32
  }
  func.func @transform_1(%arg0: i32, %arg1: i32) -> (i32, i32) {
    %c0_i32 = arith.constant 0 : i32
    %c0_i32_0 = arith.constant 0 : i32
    return %arg1, %c0_i32 : i32, i32
  }
  func.func @transform_2(%arg0: i32, %arg1: i32) -> (i32, i32) {
    %c0_i32 = arith.constant 0 : i32
    %c0_i32_0 = arith.constant 0 : i32
    return %arg0, %c0_i32 : i32, i32
  }
  func.func @transform_3(%arg0: i32, %arg1: i32) -> (i32, i32) {
    %c0_i32 = arith.constant 0 : i32
    %c0_i32_0 = arith.constant 0 : i32
    return %arg0, %c0_i32 : i32, i32
  }
}

</mosaic_0001>

<llo_original>
// kernel: tpu_custom_call.1
$region0: #{tpu_custom_call.1}
  #allocation0 [shape = 'u32[]', space=smem, size = 0x4, offset = 0x4, fixed_abs, tag = 'smem constant byte address 0x4 - core index']
  #allocation1 [shape = 'u32[144,128]{1,0:T(1,128)}', space=vmem, size = 0x12000, scoped, tag = 'internal scratch']
  %s0 = inlined_call_operand.hbm [shape: bf16[512,128], index: 0, kind: input, shape index: {}]
  %s1 = inlined_call_operand.hbm [shape: bf16[128,128], index: 1, kind: input, shape index: {}]
  %s2 = inlined_call_operand.hbm [shape: f32[512,128], index: 2, kind: output, shape index: {0}]
  %s3 = inlined_call_operand.hbm [shape: f32[8,128], index: 3, kind: output, shape index: {1}]
  %4 = xla_tuple %s2, %s3
  %s5 = sld [smem:[#allocation0]]
  $region46: #{tpu_custom_call.1} parent=0
    _
  %s7 = ssub.s32 1, %s5
  %s8 = scalar_select 0, %s7, %s5
  $region1: #{tpu_custom_call.1} parent=0
    #allocation2 [shape = 'u8[131072]{0}', space=vmem, size = 0x20000, scoped, tag = 'input window, operand 0, single buffered']
    #allocation3 [shape = 's32[1]{0}', space=sflag, size = 0x4, scoped, tag = 'scoped memory for tpu_custom_call.1']
    #allocation4 [shape = 's32[1]{0}', space=sflag, size = 0x4, scoped, tag = 'scoped memory for tpu_custom_call.1']
    #allocation5 [shape = 'u8[32768]{0}', space=vmem, size = 0x8000, scoped, tag = 'input window, operand 1, single buffered']
    #allocation6 [shape = 's32[1]{0}', space=sflag, size = 0x4, scoped, tag = 'scoped memory for tpu_custom_call.1']
    #allocation7 [shape = 'u8[262144]{0}', space=vmem, size = 0x40000, scoped, tag = 'output window, operand 0, single buffered']
    #allocation8 [shape = 'u8[4096]{0}', space=vmem, size = 0x1000, scoped, tag = 'output window, operand 1, single buffered']
    #allocation9 [shape = 's32[1]{0}', space=sflag, size = 0x4, scoped, tag = 'scoped memory for tpu_custom_call.1']
    %9 = vsyncpa [#allocation3], 0
    %10 = vsyncpa [#allocation6], 0
    %11 = vsyncpa [#allocation4], 0
    %12 = vsyncpa [#allocation9], 0
    // Predicated region
    $region2: #{tpu_custom_call.1} parent=1 // pred_check
      _
    $region3: #{tpu_custom_call.1} parent=1 // pred_check_branch
      %14 = sbr.rel (0) target = $region5
    $region4: #{tpu_custom_call.1} parent=1 // pred_region
      %s16 = ssub.s32 4096, 4096
      %17 = vsyncadd [#allocation3], %s16
      %s18 = sshll.u32 [#allocation2], 4
      %s19 = int_to_ptr.vmem [resolvable:$true] %s18
      %24 = dma.hbm_to_vmem [thread:$0]  %s0, 4096, %s19, [#allocation3], 64, 64, 4
    $region5: #{tpu_custom_call.1} parent=1 // pred_fallthru
      _
    // Predicated region
    $region6: #{tpu_custom_call.1} parent=1 // pred_check
      _
    $region7: #{tpu_custom_call.1} parent=1 // pred_check_branch
      %26 = sbr.rel (0) target = $region9
    $region8: #{tpu_custom_call.1} parent=1 // pred_region
      %s28 = ssub.s32 1024, 1024
      %29 = vsyncadd [#allocation6], %s28
      %s30 = sshll.u32 [#allocation5], 4
      %s31 = int_to_ptr.vmem [resolvable:$true] %s30
      %36 = dma.hbm_to_vmem [thread:$0]  %s1, 1024, %s31, [#allocation6], 64, 64, 4
    $region9: #{tpu_custom_call.1} parent=1 // pred_fallthru
      _
    // Predicated region
    $region10: #{tpu_custom_call.1} parent=1 // pred_check
      _
    $region11: #{tpu_custom_call.1} parent=1 // pred_check_branch
      %38 = sbr.rel (0) target = $region13
    $region12: #{tpu_custom_call.1} parent=1 // pred_region
      %39 = dma.done [#allocation3], 4096
    $region13: #{tpu_custom_call.1} parent=1 // pred_fallthru
      _
    // Predicated region
    $region14: #{tpu_custom_call.1} parent=1 // pred_check
      _
    $region15: #{tpu_custom_call.1} parent=1 // pred_check_branch
      %41 = sbr.rel (0) target = $region17
    $region16: #{tpu_custom_call.1} parent=1 // pred_region
      %42 = dma.done [#allocation6], 1024
    $region17: #{tpu_custom_call.1} parent=1 // pred_fallthru
      _
    %v44 = vld [vmem:[#allocation2] sm:$0xf]
    %v45 = vld [vmem:[#allocation2 + $0x4] sm:$0xf]
    %v46 = vld [vmem:[#allocation2 + $0x8] sm:$0xf]
    %v47 = vld [vmem:[#allocation2 + $0xc] sm:$0xf]
    %v48 = vld [vmem:[#allocation2 + $0x10] sm:$0xf]
    %v49 = vld [vmem:[#allocation2 + $0x14] sm:$0xf]
    %v50 = vld [vmem:[#allocation2 + $0x18] sm:$0xf]
    %v51 = vld [vmem:[#allocation2 + $0x1c] sm:$0xf]
    %v52 = vld [vmem:[#allocation2 + $0x20] sm:$0xf]
    %v53 = vld [vmem:[#allocation2 + $0x24] sm:$0xf]
    %v54 = vld [vmem:[#allocation2 + $0x28] sm:$0xf]
    %v55 = vld [vmem:[#allocation2 + $0x2c] sm:$0xf]
    %v56 = vld [vmem:[#allocation2 + $0x30] sm:$0xf]
    %v57 = vld [vmem:[#allocation2 + $0x34] sm:$0xf]
    %v58 = vld [vmem:[#allocation2 + $0x38] sm:$0xf]
    %v59 = vld [vmem:[#allocation2 + $0x3c] sm:$0xf]
    %v60 = vld [vmem:[#allocation2 + $0x40] sm:$0xf]
    %v61 = vld [vmem:[#allocation2 + $0x44] sm:$0xf]
    %v62 = vld [vmem:[#allocation2 + $0x48] sm:$0xf]
    %v63 = vld [vmem:[#allocation2 + $0x4c] sm:$0xf]
    %v64 = vld [vmem:[#allocation2 + $0x50] sm:$0xf]
    %v65 = vld [vmem:[#allocation2 + $0x54] sm:$0xf]
    %v66 = vld [vmem:[#allocation2 + $0x58] sm:$0xf]
    %v67 = vld [vmem:[#allocation2 + $0x5c] sm:$0xf]
    %v68 = vld [vmem:[#allocation2 + $0x60] sm:$0xf]
    %v69 = vld [vmem:[#allocation2 + $0x64] sm:$0xf]
    %v70 = vld [vmem:[#allocation2 + $0x68] sm:$0xf]
    %v71 = vld [vmem:[#allocation2 + $0x6c] sm:$0xf]
    %v72 = vld [vmem:[#allocation2 + $0x70] sm:$0xf]
    %v73 = vld [vmem:[#allocation2 + $0x74] sm:$0xf]
    %v74 = vld [vmem:[#allocation2 + $0x78] sm:$0xf]
    %v75 = vld [vmem:[#allocation2 + $0x7c] sm:$0xf]
    %v76 = vld [vmem:[#allocation2 + $0x80] sm:$0xf]
    %v77 = vld [vmem:[#allocation2 + $0x84] sm:$0xf]
    %v78 = vld [vmem:[#allocation2 + $0x88] sm:$0xf]
    %v79 = vld [vmem:[#allocation2 + $0x8c] sm:$0xf]
    %v80 = vld [vmem:[#allocation2 + $0x90] sm:$0xf]
    %v81 = vld [vmem:[#allocation2 + $0x94] sm:$0xf]
    %v82 = vld [vmem:[#allocation2 + $0x98] sm:$0xf]
    %v83 = vld [vmem:[#allocation2 + $0x9c] sm:$0xf]
    %v84 = vld [vmem:[#allocation2 + $0xa0] sm:$0xf]
    %v85 = vld [vmem:[#allocation2 + $0xa4] sm:$0xf]
    %v86 = vld [vmem:[#allocation2 + $0xa8] sm:$0xf]
    %v87 = vld [vmem:[#allocation2 + $0xac] sm:$0xf]
    %v88 = vld [vmem:[#allocation2 + $0xb0] sm:$0xf]
    %v89 = vld [vmem:[#allocation2 + $0xb4] sm:$0xf]
    %v90 = vld [vmem:[#allocation2 + $0xb8] sm:$0xf]
    %v91 = vld [vmem:[#allocation2 + $0xbc] sm:$0xf]
    %v92 = vld [vmem:[#allocation2 + $0xc0] sm:$0xf]
    %v93 = vld [vmem:[#allocation2 + $0xc4] sm:$0xf]
    %v94 = vld [vmem:[#allocation2 + $0xc8] sm:$0xf]
    %v95 = vld [vmem:[#allocation2 + $0xcc] sm:$0xf]
    %v96 = vld [vmem:[#allocation2 + $0xd0] sm:$0xf]
    %v97 = vld [vmem:[#allocation2 + $0xd4] sm:$0xf]
    %v98 = vld [vmem:[#allocation2 + $0xd8] sm:$0xf]
    %v99 = vld [vmem:[#allocation2 + $0xdc] sm:$0xf]
    %v100 = vld [vmem:[#allocation2 + $0xe0] sm:$0xf]
    %v101 = vld [vmem:[#allocation2 + $0xe4] sm:$0xf]
    %v102 = vld [vmem:[#allocation2 + $0xe8] sm:$0xf]
    %v103 = vld [vmem:[#allocation2 + $0xec] sm:$0xf]
    %v104 = vld [vmem:[#allocation2 + $0xf0] sm:$0xf]
    %v105 = vld [vmem:[#allocation2 + $0xf4] sm:$0xf]
    %v106 = vld [vmem:[#allocation2 + $0xf8] sm:$0xf]
    %v107 = vld [vmem:[#allocation2 + $0xfc] sm:$0xf]
    %v108 = vld [vmem:[#allocation5] sm:$0xf]
    %v109 = vld [vmem:[#allocation5 + $0x4] sm:$0xf]
    %v110 = vld [vmem:[#allocation5 + $0x8] sm:$0xf]
    %v111 = vld [vmem:[#allocation5 + $0xc] sm:$0xf]
    %v112 = vld [vmem:[#allocation5 + $0x10] sm:$0xf]
    %v113 = vld [vmem:[#allocation5 + $0x14] sm:$0xf]
    %v114 = vld [vmem:[#allocation5 + $0x18] sm:$0xf]
    %v115 = vld [vmem:[#allocation5 + $0x1c] sm:$0xf]
    %v116 = vld [vmem:[#allocation5 + $0x20] sm:$0xf]
    %v117 = vld [vmem:[#allocation5 + $0x24] sm:$0xf]
    %v118 = vld [vmem:[#allocation5 + $0x28] sm:$0xf]
    %v119 = vld [vmem:[#allocation5 + $0x2c] sm:$0xf]
    %v120 = vld [vmem:[#allocation5 + $0x30] sm:$0xf]
    %v121 = vld [vmem:[#allocation5 + $0x34] sm:$0xf]
    %v122 = vld [vmem:[#allocation5 + $0x38] sm:$0xf]
    %v123 = vld [vmem:[#allocation5 + $0x3c] sm:$0xf]
    %v188 = vunpack.c.l.b16 %v44
    %v189 = vunpack.c.l.b16 %v45
    %v190 = vunpack.c.l.b16 %v46
    %v191 = vunpack.c.l.b16 %v47
    %v192 = vunpack.c.l.b16 %v48
    %v193 = vunpack.c.l.b16 %v49
    %v194 = vunpack.c.l.b16 %v50
    %v195 = vunpack.c.l.b16 %v51
    %v196 = vunpack.c.l.b16 %v52
    %v197 = vunpack.c.l.b16 %v53
    %v198 = vunpack.c.l.b16 %v54
    %v199 = vunpack.c.l.b16 %v55
    %v200 = vunpack.c.l.b16 %v56
    %v201 = vunpack.c.l.b16 %v57
    %v202 = vunpack.c.l.b16 %v58
    %v203 = vunpack.c.l.b16 %v59
    %v204 = vunpack.c.l.b16 %v60
    %v205 = vunpack.c.l.b16 %v61
    %v206 = vunpack.c.l.b16 %v62
    %v207 = vunpack.c.l.b16 %v63
    %v208 = vunpack.c.l.b16 %v64
    %v209 = vunpack.c.l.b16 %v65
    %v210 = vunpack.c.l.b16 %v66
    %v211 = vunpack.c.l.b16 %v67
    %v212 = vunpack.c.l.b16 %v68
    %v213 = vunpack.c.l.b16 %v69
    %v214 = vunpack.c.l.b16 %v70
    %v215 = vunpack.c.l.b16 %v71
    %v216 = vunpack.c.l.b16 %v72
    %v217 = vunpack.c.l.b16 %v73
    %v218 = vunpack.c.l.b16 %v74
    %v219 = vunpack.c.l.b16 %v75
    %v220 = vunpack.c.l.b16 %v76
    %v221 = vunpack.c.l.b16 %v77
    %v222 = vunpack.c.l.b16 %v78
    %v223 = vunpack.c.l.b16 %v79
    %v224 = vunpack.c.l.b16 %v80
    %v225 = vunpack.c.l.b16 %v81
    %v226 = vunpack.c.l.b16 %v82
    %v227 = vunpack.c.l.b16 %v83
    %v228 = vunpack.c.l.b16 %v84
    %v229 = vunpack.c.l.b16 %v85
    %v230 = vunpack.c.l.b16 %v86
    %v231 = vunpack.c.l.b16 %v87
    %v232 = vunpack.c.l.b16 %v88
    %v233 = vunpack.c.l.b16 %v89
    %v234 = vunpack.c.l.b16 %v90
    %v235 = vunpack.c.l.b16 %v91
    %v236 = vunpack.c.l.b16 %v92
    %v237 = vunpack.c.l.b16 %v93
    %v238 = vunpack.c.l.b16 %v94
    %v239 = vunpack.c.l.b16 %v95
    %v240 = vunpack.c.l.b16 %v96
    %v241 = vunpack.c.l.b16 %v97
    %v242 = vunpack.c.l.b16 %v98
    %v243 = vunpack.c.l.b16 %v99
    %v244 = vunpack.c.l.b16 %v100
    %v245 = vunpack.c.l.b16 %v101
    %v246 = vunpack.c.l.b16 %v102
    %v247 = vunpack.c.l.b16 %v103
    %v248 = vunpack.c.l.b16 %v104
    %v249 = vunpack.c.l.b16 %v105
    %v250 = vunpack.c.l.b16 %v106
    %v251 = vunpack.c.l.b16 %v107
    %v252 = vpack.c.b16 %v189, %v188
    %v253 = vpack.c.b16 %v191, %v190
    %v254 = vpack.c.b16 %v193, %v192
    %v255 = vpack.c.b16 %v195, %v194
    %v256 = vpack.c.b16 %v197, %v196
    %v257 = vpack.c.b16 %v199, %v198
    %v258 = vpack.c.b16 %v201, %v200
    %v259 = vpack.c.b16 %v203, %v202
    %v260 = vpack.c.b16 %v205, %v204
    %v261 = vpack.c.b16 %v207, %v206
    %v262 = vpack.c.b16 %v209, %v208
    %v263 = vpack.c.b16 %v211, %v210
    %v264 = vpack.c.b16 %v213, %v212
    %v265 = vpack.c.b16 %v215, %v214
    %v266 = vpack.c.b16 %v217, %v216
    %v267 = vpack.c.b16 %v219, %v218
    %v268 = vpack.c.b16 %v221, %v220
    %v269 = vpack.c.b16 %v223, %v222
    %v270 = vpack.c.b16 %v225, %v224
    %v271 = vpack.c.b16 %v227, %v226
    %v272 = vpack.c.b16 %v229, %v228
    %v273 = vpack.c.b16 %v231, %v230
    %v274 = vpack.c.b16 %v233, %v232
    %v275 = vpack.c.b16 %v235, %v234
    %v276 = vpack.c.b16 %v237, %v236
    %v277 = vpack.c.b16 %v239, %v238
    %v278 = vpack.c.b16 %v241, %v240
    %v279 = vpack.c.b16 %v243, %v242
    %v280 = vpack.c.b16 %v245, %v244
    %v281 = vpack.c.b16 %v247, %v246
    %v282 = vpack.c.b16 %v249, %v248
    %v283 = vpack.c.b16 %v251, %v250
    %v332 = vunpack.c.l.b16 %v108
    %v333 = vunpack.c.l.b16 %v109
    %v334 = vunpack.c.l.b16 %v110
    %v335 = vunpack.c.l.b16 %v111
    %v336 = vunpack.c.l.b16 %v112
    %v337 = vunpack.c.l.b16 %v113
    %v338 = vunpack.c.l.b16 %v114
    %v339 = vunpack.c.l.b16 %v115
    %v340 = vunpack.c.l.b16 %v116
    %v341 = vunpack.c.l.b16 %v117
    %v342 = vunpack.c.l.b16 %v118
    %v343 = vunpack.c.l.b16 %v119
    %v344 = vunpack.c.l.b16 %v120
    %v345 = vunpack.c.l.b16 %v121
    %v346 = vunpack.c.l.b16 %v122
    %v347 = vunpack.c.l.b16 %v123
    %v348 = vpack.c.b16 %v333, %v332
    %v349 = vpack.c.b16 %v335, %v334
    %v350 = vpack.c.b16 %v337, %v336
    %v351 = vpack.c.b16 %v339, %v338
    %v352 = vpack.c.b16 %v341, %v340
    %v353 = vpack.c.b16 %v343, %v342
    %v354 = vpack.c.b16 %v345, %v344
    %v355 = vpack.c.b16 %v347, %v346
    %364 = vmatprep.subr.bf16.mxu0 0
    %365 = vmatpush1.bf16.msra.mxu0 %v348
    %366 = vmatprep.subr.bf16.mxu0 0
    %367 = vmatpush1.bf16.msra.mxu0 %v349
    %368 = vmatprep.subr.bf16.mxu0 0
    %369 = vmatpush1.bf16.msra.mxu0 %v350
    %370 = vmatprep.subr.bf16.mxu0 0
    %371 = vmatpush1.bf16.msra.mxu0 %v351
    %372 = vmatprep.subr.bf16.mxu0 0
    %373 = vmatpush1.bf16.msra.mxu0 %v352
    %374 = vmatprep.subr.bf16.mxu0 0
    %375 = vmatpush1.bf16.msra.mxu0 %v353
    %376 = vmatprep.subr.bf16.mxu0 0
    %377 = vmatpush1.bf16.msra.mxu0 %v354
    %378 = vmatprep.subr.bf16.mxu0 0
    %379 = vmatpush1.bf16.msra.mxu0 %v355
    %380 = vmatprep.subr.bf16.mxu0 0
    %381 = vmatpush1.bf16.msra.mxu0 0
    %382 = vmatprep.subr.bf16.mxu0 0
    %383 = vmatpush1.bf16.msra.mxu0 0
    %384 = vmatprep.subr.bf16.mxu0 0
    %385 = vmatpush1.bf16.msra.mxu0 0
    %386 = vmatprep.subr.bf16.mxu0 0
    %387 = vmatpush1.bf16.msra.mxu0 0
    %388 = vmatprep.subr.bf16.mxu0 0
    %389 = vmatpush1.bf16.msra.mxu0 0
    %390 = vmatprep.subr.bf16.mxu0 0
    %391 = vmatpush1.bf16.msra.mxu0 0
    %392 = vmatprep.subr.bf16.mxu0 0
    %393 = vmatpush1.bf16.msra.mxu0 0
    %394 = vmatprep.subr.bf16.mxu0 0
    %395 = vmatpush1.bf16.msra.mxu0 0
    %396 = vmatprep.mubr.bf16.mxu0 0
    %397 = vmatmul.mubr.bf16.gmra.mrb[0].mxu0 %v252
    %v398 = vpop.f32.mrb[0].mxu0
    %v399 = vadd.f32 0.0, %v398
    %v400 = vpop.f32.mrb[0].mxu0
    %v401 = vpop.f32.mrb[0].mxu0
    %v402 = vadd.f32 0.0, %v401
    %v403 = vpop.f32.mrb[0].mxu0
    %404 = vmatprep.mubr.bf16.mxu0 0
    %405 = vmatmul.mubr.bf16.gmra.mrb[0].mxu0 %v253
    %v406 = vpop.f32.mrb[0].mxu0
    %v407 = vadd.f32 0.0, %v406
    %v408 = vpop.f32.mrb[0].mxu0
    %v409 = vpop.f32.mrb[0].mxu0
    %v410 = vadd.f32 0.0, %v409
    %v411 = vpop.f32.mrb[0].mxu0
    %412 = vmatprep.mubr.bf16.mxu0 0
    %413 = vmatmul.mubr.bf16.gmra.mrb[0].mxu0 %v254
    %v414 = vpop.f32.mrb[0].mxu0
    %v415 = vadd.f32 0.0, %v414
    %v416 = vpop.f32.mrb[0].mxu0
    %v417 = vpop.f32.mrb[0].mxu0
    %v418 = vadd.f32 0.0, %v417
    %v419 = vpop.f32.mrb[0].mxu0
    %420 = vmatprep.mubr.bf16.mxu0 0
    %421 = vmatmul.mubr.bf16.gmra.mrb[0].mxu0 %v255
    %v422 = vpop.f32.mrb[0].mxu0
    %v423 = vadd.f32 0.0, %v422
    %v424 = vpop.f32.mrb[0].mxu0
    %v425 = vpop.f32.mrb[0].mxu0
    %v426 = vadd.f32 0.0, %v425
    %v427 = vpop.f32.mrb[0].mxu0
    %428 = vmatprep.mubr.bf16.mxu0 0
    %429 = vmatmul.mubr.bf16.gmra.mrb[0].mxu0 %v256
    %v430 = vpop.f32.mrb[0].mxu0
    %v431 = vadd.f32 0.0, %v430
    %v432 = vpop.f32.mrb[0].mxu0
    %v433 = vpop.f32.mrb[0].mxu0
    %v434 = vadd.f32 0.0, %v433
    %v435 = vpop.f32.mrb[0].mxu0
    %436 = vmatprep.mubr.bf16.mxu0 0
    %437 = vmatmul.mubr.bf16.gmra.mrb[0].mxu0 %v257
    %v438 = vpop.f32.mrb[0].mxu0
    %v439 = vadd.f32 0.0, %v438
    %v440 = vpop.f32.mrb[0].mxu0
    %v441 = vpop.f32.mrb[0].mxu0
    %v442 = vadd.f32 0.0, %v441
    %v443 = vpop.f32.mrb[0].mxu0
    %444 = vmatprep.mubr.bf16.mxu0 0
    %445 = vmatmul.mubr.bf16.gmra.mrb[0].mxu0 %v258
    %v446 = vpop.f32.mrb[0].mxu0
    %v447 = vadd.f32 0.0, %v446
    %v448 = vpop.f32.mrb[0].mxu0
    %v449 = vpop.f32.mrb[0].mxu0
    %v450 = vadd.f32 0.0, %v449
    %v451 = vpop.f32.mrb[0].mxu0
    %452 = vmatprep.mubr.bf16.mxu0 0
    %453 = vmatmul.mubr.bf16.gmra.mrb[0].mxu0 %v259
    %v454 = vpop.f32.mrb[0].mxu0
    %v455 = vadd.f32 0.0, %v454
    %v456 = vpop.f32.mrb[0].mxu0
    %v457 = vpop.f32.mrb[0].mxu0
    %v458 = vadd.f32 0.0, %v457
    %v459 = vpop.f32.mrb[0].mxu0
    %460 = vmatprep.mubr.bf16.mxu0 0
    %461 = vmatmul.mubr.bf16.gmra.mrb[0].mxu0 %v260
    %v462 = vpop.f32.mrb[0].mxu0
    %v463 = vadd.f32 0.0, %v462
    %v464 = vpop.f32.mrb[0].mxu0
    %v465 = vpop.f32.mrb[0].mxu0
    %v466 = vadd.f32 0.0, %v465
    %v467 = vpop.f32.mrb[0].mxu0
    %468 = vmatprep.mubr.bf16.mxu0 0
    %469 = vmatmul.mubr.bf16.gmra.mrb[0].mxu0 %v261
    %v470 = vpop.f32.mrb[0].mxu0
    %v471 = vadd.f32 0.0, %v470
    %v472 = vpop.f32.mrb[0].mxu0
    %v473 = vpop.f32.mrb[0].mxu0
    %v474 = vadd.f32 0.0, %v473
    %v475 = vpop.f32.mrb[0].mxu0
    %476 = vmatprep.mubr.bf16.mxu0 0
    %477 = vmatmul.mubr.bf16.gmra.mrb[0].mxu0 %v262
    %v478 = vpop.f32.mrb[0].mxu0
    %v479 = vadd.f32 0.0, %v478
    %v480 = vpop.f32.mrb[0].mxu0
    %v481 = vpop.f32.mrb[0].mxu0
    %v482 = vadd.f32 0.0, %v481
    %v483 = vpop.f32.mrb[0].mxu0
    %484 = vmatprep.mubr.bf16.mxu0 0
    %485 = vmatmul.mubr.bf16.gmra.mrb[0].mxu0 %v263
    %v486 = vpop.f32.mrb[0].mxu0
    %v487 = vadd.f32 0.0, %v486
    %v488 = vpop.f32.mrb[0].mxu0
    %v489 = vpop.f32.mrb[0].mxu0
    %v490 = vadd.f32 0.0, %v489
    %v491 = vpop.f32.mrb[0].mxu0
    %492 = vmatprep.mubr.bf16.mxu0 0
    %493 = vmatmul.mubr.bf16.gmra.mrb[0].mxu0 %v264
    %v494 = vpop.f32.mrb[0].mxu0
    %v495 = vadd.f32 0.0, %v494
    %v496 = vpop.f32.mrb[0].mxu0
    %v497 = vpop.f32.mrb[0].mxu0
    %v498 = vadd.f32 0.0, %v497
    %v499 = vpop.f32.mrb[0].mxu0
    %500 = vmatprep.mubr.bf16.mxu0 0
    %501 = vmatmul.mubr.bf16.gmra.mrb[0].mxu0 %v265
    %v502 = vpop.f32.mrb[0].mxu0
    %v503 = vadd.f32 0.0, %v502
    %v504 = vpop.f32.mrb[0].mxu0
    %v505 = vpop.f32.mrb[0].mxu0
    %v506 = vadd.f32 0.0, %v505
    %v507 = vpop.f32.mrb[0].mxu0
    %508 = vmatprep.mubr.bf16.mxu0 0
    %509 = vmatmul.mubr.bf16.gmra.mrb[0].mxu0 %v266
    %v510 = vpop.f32.mrb[0].mxu0
    %v511 = vadd.f32 0.0, %v510
    %v512 = vpop.f32.mrb[0].mxu0
    %v513 = vpop.f32.mrb[0].mxu0
    %v514 = vadd.f32 0.0, %v513
    %v515 = vpop.f32.mrb[0].mxu0
    %516 = vmatprep.mubr.bf16.mxu0 0
    %517 = vmatmul.mubr.bf16.gmra.mrb[0].mxu0 %v267
    %v518 = vpop.f32.mrb[0].mxu0
    %v519 = vadd.f32 0.0, %v518
    %v520 = vpop.f32.mrb[0].mxu0
    %v521 = vpop.f32.mrb[0].mxu0
    %v522 = vadd.f32 0.0, %v521
    %v523 = vpop.f32.mrb[0].mxu0
    %524 = vmatprep.mubr.bf16.mxu0 0
    %525 = vmatmul.mubr.bf16.gmra.mrb[0].mxu0 %v268
    %v526 = vpop.f32.mrb[0].mxu0
    %v527 = vadd.f32 0.0, %v526
    %v528 = vpop.f32.mrb[0].mxu0
    %v529 = vpop.f32.mrb[0].mxu0
    %v530 = vadd.f32 0.0, %v529
    %v531 = vpop.f32.mrb[0].mxu0
    %532 = vmatprep.mubr.bf16.mxu0 0
    %533 = vmatmul.mubr.bf16.gmra.mrb[0].mxu0 %v269
    %v534 = vpop.f32.mrb[0].mxu0
    %v535 = vadd.f32 0.0, %v534
    %v536 = vpop.f32.mrb[0].mxu0
    %v537 = vpop.f32.mrb[0].mxu0
    %v538 = vadd.f32 0.0, %v537
    %v539 = vpop.f32.mrb[0].mxu0
    %540 = vmatprep.mubr.bf16.mxu0 0
    %541 = vmatmul.mubr.bf16.gmra.mrb[0].mxu0 %v270
    %v542 = vpop.f32.mrb[0].mxu0
    %v543 = vadd.f32 0.0, %v542
    %v544 = vpop.f32.mrb[0].mxu0
    %v545 = vpop.f32.mrb[0].mxu0
    %v546 = vadd.f32 0.0, %v545
    %v547 = vpop.f32.mrb[0].mxu0
    %548 = vmatprep.mubr.bf16.mxu0 0
    %549 = vmatmul.mubr.bf16.gmra.mrb[0].mxu0 %v271
    %v550 = vpop.f32.mrb[0].mxu0
    %v551 = vadd.f32 0.0, %v550
    %v552 = vpop.f32.mrb[0].mxu0
    %v553 = vpop.f32.mrb[0].mxu0
    %v554 = vadd.f32 0.0, %v553
    %v555 = vpop.f32.mrb[0].mxu0
    %556 = vmatprep.mubr.bf16.mxu0 0
    %557 = vmatmul.mubr.bf16.gmra.mrb[0].mxu0 %v272
    %v558 = vpop.f32.mrb[0].mxu0
    %v559 = vadd.f32 0.0, %v558
    %v560 = vpop.f32.mrb[0].mxu0
    %v561 = vpop.f32.mrb[0].mxu0
    %v562 = vadd.f32 0.0, %v561
    %v563 = vpop.f32.mrb[0].mxu0
    %564 = vmatprep.mubr.bf16.mxu0 0
    %565 = vmatmul.mubr.bf16.gmra.mrb[0].mxu0 %v273
    %v566 = vpop.f32.mrb[0].mxu0
    %v567 = vadd.f32 0.0, %v566
    %v568 = vpop.f32.mrb[0].mxu0
    %v569 = vpop.f32.mrb[0].mxu0
    %v570 = vadd.f32 0.0, %v569
    %v571 = vpop.f32.mrb[0].mxu0
    %572 = vmatprep.mubr.bf16.mxu0 0
    %573 = vmatmul.mubr.bf16.gmra.mrb[0].mxu0 %v274
    %v574 = vpop.f32.mrb[0].mxu0
    %v575 = vadd.f32 0.0, %v574
    %v576 = vpop.f32.mrb[0].mxu0
    %v577 = vpop.f32.mrb[0].mxu0
    %v578 = vadd.f32 0.0, %v577
    %v579 = vpop.f32.mrb[0].mxu0
    %580 = vmatprep.mubr.bf16.mxu0 0
    %581 = vmatmul.mubr.bf16.gmra.mrb[0].mxu0 %v275
    %v582 = vpop.f32.mrb[0].mxu0
    %v583 = vadd.f32 0.0, %v582
    %v584 = vpop.f32.mrb[0].mxu0
    %v585 = vpop.f32.mrb[0].mxu0
    %v586 = vadd.f32 0.0, %v585
    %v587 = vpop.f32.mrb[0].mxu0
    %588 = vmatprep.mubr.bf16.mxu0 0
    %589 = vmatmul.mubr.bf16.gmra.mrb[0].mxu0 %v276
    %v590 = vpop.f32.mrb[0].mxu0
    %v591 = vadd.f32 0.0, %v590
    %v592 = vpop.f32.mrb[0].mxu0
    %v593 = vpop.f32.mrb[0].mxu0
    %v594 = vadd.f32 0.0, %v593
    %v595 = vpop.f32.mrb[0].mxu0
    %596 = vmatprep.mubr.bf16.mxu0 0
    %597 = vmatmul.mubr.bf16.gmra.mrb[0].mxu0 %v277
    %v598 = vpop.f32.mrb[0].mxu0
    %v599 = vadd.f32 0.0, %v598
    %v600 = vpop.f32.mrb[0].mxu0
    %v601 = vpop.f32.mrb[0].mxu0
    %v602 = vadd.f32 0.0, %v601
    %v603 = vpop.f32.mrb[0].mxu0
    %604 = vmatprep.mubr.bf16.mxu0 0
    %605 = vmatmul.mubr.bf16.gmra.mrb[0].mxu0 %v278
    %v606 = vpop.f32.mrb[0].mxu0
    %v607 = vadd.f32 0.0, %v606
    %v608 = vpop.f32.mrb[0].mxu0
    %v609 = vpop.f32.mrb[0].mxu0
    %v610 = vadd.f32 0.0, %v609
    %v611 = vpop.f32.mrb[0].mxu0
    %612 = vmatprep.mubr.bf16.mxu0 0
    %613 = vmatmul.mubr.bf16.gmra.mrb[0].mxu0 %v279
    %v614 = vpop.f32.mrb[0].mxu0
    %v615 = vadd.f32 0.0, %v614
    %v616 = vpop.f32.mrb[0].mxu0
    %v617 = vpop.f32.mrb[0].mxu0
    %v618 = vadd.f32 0.0, %v617
    %v619 = vpop.f32.mrb[0].mxu0
    %620 = vmatprep.mubr.bf16.mxu0 0
    %621 = vmatmul.mubr.bf16.gmra.mrb[0].mxu0 %v280
    %v622 = vpop.f32.mrb[0].mxu0
    %v623 = vadd.f32 0.0, %v622
    %v624 = vpop.f32.mrb[0].mxu0
    %v625 = vpop.f32.mrb[0].mxu0
    %v626 = vadd.f32 0.0, %v625
    %v627 = vpop.f32.mrb[0].mxu0
    %628 = vmatprep.mubr.bf16.mxu0 0
    %629 = vmatmul.mubr.bf16.gmra.mrb[0].mxu0 %v281
    %v630 = vpop.f32.mrb[0].mxu0
    %v631 = vadd.f32 0.0, %v630
    %v632 = vpop.f32.mrb[0].mxu0
    %v633 = vpop.f32.mrb[0].mxu0
    %v634 = vadd.f32 0.0, %v633
    %v635 = vpop.f32.mrb[0].mxu0
    %636 = vmatprep.mubr.bf16.mxu0 0
    %637 = vmatmul.mubr.bf16.gmra.mrb[0].mxu0 %v282
    %v638 = vpop.f32.mrb[0].mxu0
    %v639 = vadd.f32 0.0, %v638
    %v640 = vpop.f32.mrb[0].mxu0
    %v641 = vpop.f32.mrb[0].mxu0
    %v642 = vadd.f32 0.0, %v641
    %v643 = vpop.f32.mrb[0].mxu0
    %644 = vmatprep.mubr.bf16.mxu0 0
    %645 = vmatmul.mubr.bf16.gmra.mrb[0].mxu0 %v283
    %v646 = vpop.f32.mrb[0].mxu0
    %v647 = vadd.f32 0.0, %v646
    %v648 = vpop.f32.mrb[0].mxu0
    %v649 = vpop.f32.mrb[0].mxu0
    %v650 = vadd.f32 0.0, %v649
    %v651 = vpop.f32.mrb[0].mxu0
    %652 = vdwg.mxu0
    %p653 = scmp.eq.s32.totalorder 0, 0
    // Predicated region
    $region18: #{tpu_custom_call.1} parent=1 // pred_check
      %p654 = pneg %p653
    $region19: #{tpu_custom_call.1} parent=1 // pred_check_branch
      %656 = sbr.rel (%p654) target = $region21
    $region20: #{tpu_custom_call.1} parent=1 // pred_region
      %657 = vst [vmem:[#allocation7] sm:$0xff] %v399
      %658 = vst [vmem:[#allocation7 + $0x8] sm:$0xff] %v402
      %659 = vst [vmem:[#allocation7 + $0x10] sm:$0xff] %v407
      %660 = vst [vmem:[#allocation7 + $0x18] sm:$0xff] %v410
      %661 = vst [vmem:[#allocation7 + $0x20] sm:$0xff] %v415
      %662 = vst [vmem:[#allocation7 + $0x28] sm:$0xff] %v418
      %663 = vst [vmem:[#allocation7 + $0x30] sm:$0xff] %v423
      %664 = vst [vmem:[#allocation7 + $0x38] sm:$0xff] %v426
      %665 = vst [vmem:[#allocation7 + $0x40] sm:$0xff] %v431
      %666 = vst [vmem:[#allocation7 + $0x48] sm:$0xff] %v434
      %667 = vst [vmem:[#allocation7 + $0x50] sm:$0xff] %v439
      %668 = vst [vmem:[#allocation7 + $0x58] sm:$0xff] %v442
      %669 = vst [vmem:[#allocation7 + $0x60] sm:$0xff] %v447
      %670 = vst [vmem:[#allocation7 + $0x68] sm:$0xff] %v450
      %671 = vst [vmem:[#allocation7 + $0x70] sm:$0xff] %v455
      %672 = vst [vmem:[#allocation7 + $0x78] sm:$0xff] %v458
      %673 = vst [vmem:[#allocation7 + $0x80] sm:$0xff] %v463
      %674 = vst [vmem:[#allocation7 + $0x88] sm:$0xff] %v466
      %675 = vst [vmem:[#allocation7 + $0x90] sm:$0xff] %v471
      %676 = vst [vmem:[#allocation7 + $0x98] sm:$0xff] %v474
      %677 = vst [vmem:[#allocation7 + $0xa0] sm:$0xff] %v479
      %678 = vst [vmem:[#allocation7 + $0xa8] sm:$0xff] %v482
      %679 = vst [vmem:[#allocation7 + $0xb0] sm:$0xff] %v487
      %680 = vst [vmem:[#allocation7 + $0xb8] sm:$0xff] %v490
      %681 = vst [vmem:[#allocation7 + $0xc0] sm:$0xff] %v495
      %682 = vst [vmem:[#allocation7 + $0xc8] sm:$0xff] %v498
      %683 = vst [vmem:[#allocation7 + $0xd0] sm:$0xff] %v503
      %684 = vst [vmem:[#allocation7 + $0xd8] sm:$0xff] %v506
      %685 = vst [vmem:[#allocation7 + $0xe0] sm:$0xff] %v511
      %686 = vst [vmem:[#allocation7 + $0xe8] sm:$0xff] %v514
      %687 = vst [vmem:[#allocation7 + $0xf0] sm:$0xff] %v519
      %688 = vst [vmem:[#allocation7 + $0xf8] sm:$0xff] %v522
      %689 = vst [vmem:[#allocation7 + $0x100] sm:$0xff] %v527
      %690 = vst [vmem:[#allocation7 + $0x108] sm:$0xff] %v530
      %691 = vst [vmem:[#allocation7 + $0x110] sm:$0xff] %v535
      %692 = vst [vmem:[#allocation7 + $0x118] sm:$0xff] %v538
      %693 = vst [vmem:[#allocation7 + $0x120] sm:$0xff] %v543
      %694 = vst [vmem:[#allocation7 + $0x128] sm:$0xff] %v546
      %695 = vst [vmem:[#allocation7 + $0x130] sm:$0xff] %v551
      %696 = vst [vmem:[#allocation7 + $0x138] sm:$0xff] %v554
      %697 = vst [vmem:[#allocation7 + $0x140] sm:$0xff] %v559
      %698 = vst [vmem:[#allocation7 + $0x148] sm:$0xff] %v562
      %699 = vst [vmem:[#allocation7 + $0x150] sm:$0xff] %v567
      %700 = vst [vmem:[#allocation7 + $0x158] sm:$0xff] %v570
      %701 = vst [vmem:[#allocation7 + $0x160] sm:$0xff] %v575
      %702 = vst [vmem:[#allocation7 + $0x168] sm:$0xff] %v578
      %703 = vst [vmem:[#allocation7 + $0x170] sm:$0xff] %v583
      %704 = vst [vmem:[#allocation7 + $0x178] sm:$0xff] %v586
      %705 = vst [vmem:[#allocation7 + $0x180] sm:$0xff] %v591
      %706 = vst [vmem:[#allocation7 + $0x188] sm:$0xff] %v594
      %707 = vst [vmem:[#allocation7 + $0x190] sm:$0xff] %v599
      %708 = vst [vmem:[#allocation7 + $0x198] sm:$0xff] %v602
      %709 = vst [vmem:[#allocation7 + $0x1a0] sm:$0xff] %v607
      %710 = vst [vmem:[#allocation7 + $0x1a8] sm:$0xff] %v610
      %711 = vst [vmem:[#allocation7 + $0x1b0] sm:$0xff] %v615
      %712 = vst [vmem:[#allocation7 + $0x1b8] sm:$0xff] %v618
      %713 = vst [vmem:[#allocation7 + $0x1c0] sm:$0xff] %v623
      %714 = vst [vmem:[#allocation7 + $0x1c8] sm:$0xff] %v626
      %715 = vst [vmem:[#allocation7 + $0x1d0] sm:$0xff] %v631
      %716 = vst [vmem:[#allocation7 + $0x1d8] sm:$0xff] %v634
      %717 = vst [vmem:[#allocation7 + $0x1e0] sm:$0xff] %v639
      %718 = vst [vmem:[#allocation7 + $0x1e8] sm:$0xff] %v642
      %719 = vst [vmem:[#allocation7 + $0x1f0] sm:$0xff] %v647
      %720 = vst [vmem:[#allocation7 + $0x1f8] sm:$0xff] %v650
    $region21: #{tpu_custom_call.1} parent=1 // pred_fallthru
      _
    %p721 = scmp.gt.s32.totalorder 0, 0
    // Predicated region
    $region22: #{tpu_custom_call.1} parent=1 // pred_check
      %p722 = pneg %p721
    $region23: #{tpu_custom_call.1} parent=1 // pred_check_branch
      %724 = sbr.rel (%p722) target = $region25
    $region24: #{tpu_custom_call.1} parent=1 // pred_region
      %v725 = vld [vmem:[#allocation7] sm:$0xff]
      %v726 = vld [vmem:[#allocation7 + $0x8] sm:$0xff]
      %v727 = vld [vmem:[#allocation7 + $0x10] sm:$0xff]
      %v728 = vld [vmem:[#allocation7 + $0x18] sm:$0xff]
      %v729 = vld [vmem:[#allocation7 + $0x20] sm:$0xff]
      %v730 = vld [vmem:[#allocation7 + $0x28] sm:$0xff]
      %v731 = vld [vmem:[#allocation7 + $0x30] sm:$0xff]
      %v732 = vld [vmem:[#allocation7 + $0x38] sm:$0xff]
      %v733 = vld [vmem:[#allocation7 + $0x40] sm:$0xff]
      %v734 = vld [vmem:[#allocation7 + $0x48] sm:$0xff]
      %v735 = vld [vmem:[#allocation7 + $0x50] sm:$0xff]
      %v736 = vld [vmem:[#allocation7 + $0x58] sm:$0xff]
      %v737 = vld [vmem:[#allocation7 + $0x60] sm:$0xff]
      %v738 = vld [vmem:[#allocation7 + $0x68] sm:$0xff]
      %v739 = vld [vmem:[#allocation7 + $0x70] sm:$0xff]
      %v740 = vld [vmem:[#allocation7 + $0x78] sm:$0xff]
      %v741 = vld [vmem:[#allocation7 + $0x80] sm:$0xff]
      %v742 = vld [vmem:[#allocation7 + $0x88] sm:$0xff]
      %v743 = vld [vmem:[#allocation7 + $0x90] sm:$0xff]
      %v744 = vld [vmem:[#allocation7 + $0x98] sm:$0xff]
      %v745 = vld [vmem:[#allocation7 + $0xa0] sm:$0xff]
      %v746 = vld [vmem:[#allocation7 + $0xa8] sm:$0xff]
      %v747 = vld [vmem:[#allocation7 + $0xb0] sm:$0xff]
      %v748 = vld [vmem:[#allocation7 + $0xb8] sm:$0xff]
      %v749 = vld [vmem:[#allocation7 + $0xc0] sm:$0xff]
      %v750 = vld [vmem:[#allocation7 + $0xc8] sm:$0xff]
      %v751 = vld [vmem:[#allocation7 + $0xd0] sm:$0xff]
      %v752 = vld [vmem:[#allocation7 + $0xd8] sm:$0xff]
      %v753 = vld [vmem:[#allocation7 + $0xe0] sm:$0xff]
      %v754 = vld [vmem:[#allocation7 + $0xe8] sm:$0xff]
      %v755 = vld [vmem:[#allocation7 + $0xf0] sm:$0xff]
      %v756 = vld [vmem:[#allocation7 + $0xf8] sm:$0xff]
      %v757 = vld [vmem:[#allocation7 + $0x100] sm:$0xff]
      %v758 = vld [vmem:[#allocation7 + $0x108] sm:$0xff]
      %v759 = vld [vmem:[#allocation7 + $0x110] sm:$0xff]
      %v760 = vld [vmem:[#allocation7 + $0x118] sm:$0xff]
      %v761 = vld [vmem:[#allocation7 + $0x120] sm:$0xff]
      %v762 = vld [vmem:[#allocation7 + $0x128] sm:$0xff]
      %v763 = vld [vmem:[#allocation7 + $0x130] sm:$0xff]
      %v764 = vld [vmem:[#allocation7 + $0x138] sm:$0xff]
      %v765 = vld [vmem:[#allocation7 + $0x140] sm:$0xff]
      %v766 = vld [vmem:[#allocation7 + $0x148] sm:$0xff]
      %v767 = vld [vmem:[#allocation7 + $0x150] sm:$0xff]
      %v768 = vld [vmem:[#allocation7 + $0x158] sm:$0xff]
      %v769 = vld [vmem:[#allocation7 + $0x160] sm:$0xff]
      %v770 = vld [vmem:[#allocation7 + $0x168] sm:$0xff]
      %v771 = vld [vmem:[#allocation7 + $0x170] sm:$0xff]
      %v772 = vld [vmem:[#allocation7 + $0x178] sm:$0xff]
      %v773 = vld [vmem:[#allocation7 + $0x180] sm:$0xff]
      %v774 = vld [vmem:[#allocation7 + $0x188] sm:$0xff]
      %v775 = vld [vmem:[#allocation7 + $0x190] sm:$0xff]
      %v776 = vld [vmem:[#allocation7 + $0x198] sm:$0xff]
      %v777 = vld [vmem:[#allocation7 + $0x1a0] sm:$0xff]
      %v778 = vld [vmem:[#allocation7 + $0x1a8] sm:$0xff]
      %v779 = vld [vmem:[#allocation7 + $0x1b0] sm:$0xff]
      %v780 = vld [vmem:[#allocation7 + $0x1b8] sm:$0xff]
      %v781 = vld [vmem:[#allocation7 + $0x1c0] sm:$0xff]
      %v782 = vld [vmem:[#allocation7 + $0x1c8] sm:$0xff]
      %v783 = vld [vmem:[#allocation7 + $0x1d0] sm:$0xff]
      %v784 = vld [vmem:[#allocation7 + $0x1d8] sm:$0xff]
      %v785 = vld [vmem:[#allocation7 + $0x1e0] sm:$0xff]
      %v786 = vld [vmem:[#allocation7 + $0x1e8] sm:$0xff]
      %v787 = vld [vmem:[#allocation7 + $0x1f0] sm:$0xff]
      %v788 = vld [vmem:[#allocation7 + $0x1f8] sm:$0xff]
      %v789 = vadd.f32 %v725, %v399
      %v790 = vadd.f32 %v726, %v402
      %v791 = vadd.f32 %v727, %v407
      %v792 = vadd.f32 %v728, %v410
      %v793 = vadd.f32 %v729, %v415
      %v794 = vadd.f32 %v730, %v418
      %v795 = vadd.f32 %v731, %v423
      %v796 = vadd.f32 %v732, %v426
      %v797 = vadd.f32 %v733, %v431
      %v798 = vadd.f32 %v734, %v434
      %v799 = vadd.f32 %v735, %v439
      %v800 = vadd.f32 %v736, %v442
      %v801 = vadd.f32 %v737, %v447
      %v802 = vadd.f32 %v738, %v450
      %v803 = vadd.f32 %v739, %v455
      %v804 = vadd.f32 %v740, %v458
      %v805 = vadd.f32 %v741, %v463
      %v806 = vadd.f32 %v742, %v466
      %v807 = vadd.f32 %v743, %v471
      %v808 = vadd.f32 %v744, %v474
      %v809 = vadd.f32 %v745, %v479
      %v810 = vadd.f32 %v746, %v482
      %v811 = vadd.f32 %v747, %v487
      %v812 = vadd.f32 %v748, %v490
      %v813 = vadd.f32 %v749, %v495
      %v814 = vadd.f32 %v750, %v498
      %v815 = vadd.f32 %v751, %v503
      %v816 = vadd.f32 %v752, %v506
      %v817 = vadd.f32 %v753, %v511
      %v818 = vadd.f32 %v754, %v514
      %v819 = vadd.f32 %v755, %v519
      %v820 = vadd.f32 %v756, %v522
      %v821 = vadd.f32 %v757, %v527
      %v822 = vadd.f32 %v758, %v530
      %v823 = vadd.f32 %v759, %v535
      %v824 = vadd.f32 %v760, %v538
      %v825 = vadd.f32 %v761, %v543
      %v826 = vadd.f32 %v762, %v546
      %v827 = vadd.f32 %v763, %v551
      %v828 = vadd.f32 %v764, %v554
      %v829 = vadd.f32 %v765, %v559
      %v830 = vadd.f32 %v766, %v562
      %v831 = vadd.f32 %v767, %v567
      %v832 = vadd.f32 %v768, %v570
      %v833 = vadd.f32 %v769, %v575
      %v834 = vadd.f32 %v770, %v578
      %v835 = vadd.f32 %v771, %v583
      %v836 = vadd.f32 %v772, %v586
      %v837 = vadd.f32 %v773, %v591
      %v838 = vadd.f32 %v774, %v594
      %v839 = vadd.f32 %v775, %v599
      %v840 = vadd.f32 %v776, %v602
      %v841 = vadd.f32 %v777, %v607
      %v842 = vadd.f32 %v778, %v610
      %v843 = vadd.f32 %v779, %v615
      %v844 = vadd.f32 %v780, %v618
      %v845 = vadd.f32 %v781, %v623
      %v846 = vadd.f32 %v782, %v626
      %v847 = vadd.f32 %v783, %v631
      %v848 = vadd.f32 %v784, %v634
      %v849 = vadd.f32 %v785, %v639
      %v850 = vadd.f32 %v786, %v642
      %v851 = vadd.f32 %v787, %v647
      %v852 = vadd.f32 %v788, %v650
      %853 = vst [vmem:[#allocation7] sm:$0xff] %v789
      %854 = vst [vmem:[#allocation7 + $0x8] sm:$0xff] %v790
      %855 = vst [vmem:[#allocation7 + $0x10] sm:$0xff] %v791
      %856 = vst [vmem:[#allocation7 + $0x18] sm:$0xff] %v792
      %857 = vst [vmem:[#allocation7 + $0x20] sm:$0xff] %v793
      %858 = vst [vmem:[#allocation7 + $0x28] sm:$0xff] %v794
      %859 = vst [vmem:[#allocation7 + $0x30] sm:$0xff] %v795
      %860 = vst [vmem:[#allocation7 + $0x38] sm:$0xff] %v796
      %861 = vst [vmem:[#allocation7 + $0x40] sm:$0xff] %v797
      %862 = vst [vmem:[#allocation7 + $0x48] sm:$0xff] %v798
      %863 = vst [vmem:[#allocation7 + $0x50] sm:$0xff] %v799
      %864 = vst [vmem:[#allocation7 + $0x58] sm:$0xff] %v800
      %865 = vst [vmem:[#allocation7 + $0x60] sm:$0xff] %v801
      %866 = vst [vmem:[#allocation7 + $0x68] sm:$0xff] %v802
      %867 = vst [vmem:[#allocation7 + $0x70] sm:$0xff] %v803
      %868 = vst [vmem:[#allocation7 + $0x78] sm:$0xff] %v804
      %869 = vst [vmem:[#allocation7 + $0x80] sm:$0xff] %v805
      %870 = vst [vmem:[#allocation7 + $0x88] sm:$0xff] %v806
      %871 = vst [vmem:[#allocation7 + $0x90] sm:$0xff] %v807
      %872 = vst [vmem:[#allocation7 + $0x98] sm:$0xff] %v808
      %873 = vst [vmem:[#allocation7 + $0xa0] sm:$0xff] %v809
      %874 = vst [vmem:[#allocation7 + $0xa8] sm:$0xff] %v810
      %875 = vst [vmem:[#allocation7 + $0xb0] sm:$0xff] %v811
      %876 = vst [vmem:[#allocation7 + $0xb8] sm:$0xff] %v812
      %877 = vst [vmem:[#allocation7 + $0xc0] sm:$0xff] %v813
      %878 = vst [vmem:[#allocation7 + $0xc8] sm:$0xff] %v814
      %879 = vst [vmem:[#allocation7 + $0xd0] sm:$0xff] %v815
      %880 = vst [vmem:[#allocation7 + $0xd8] sm:$0xff] %v816
      %881 = vst [vmem:[#allocation7 + $0xe0] sm:$0xff] %v817
      %882 = vst [vmem:[#allocation7 + $0xe8] sm:$0xff] %v818
      %883 = vst [vmem:[#allocation7 + $0xf0] sm:$0xff] %v819
      %884 = vst [vmem:[#allocation7 + $0xf8] sm:$0xff] %v820
      %885 = vst [vmem:[#allocation7 + $0x100] sm:$0xff] %v821
      %886 = vst [vmem:[#allocation7 + $0x108] sm:$0xff] %v822
      %887 = vst [vmem:[#allocation7 + $0x110] sm:$0xff] %v823
      %888 = vst [vmem:[#allocation7 + $0x118] sm:$0xff] %v824
      %889 = vst [vmem:[#allocation7 + $0x120] sm:$0xff] %v825
      %890 = vst [vmem:[#allocation7 + $0x128] sm:$0xff] %v826
      %891 = vst [vmem:[#allocation7 + $0x130] sm:$0xff] %v827
      %892 = vst [vmem:[#allocation7 + $0x138] sm:$0xff] %v828
      %893 = vst [vmem:[#allocation7 + $0x140] sm:$0xff] %v829
      %894 = vst [vmem:[#allocation7 + $0x148] sm:$0xff] %v830
      %895 = vst [vmem:[#allocation7 + $0x150] sm:$0xff] %v831
      %896 = vst [vmem:[#allocation7 + $0x158] sm:$0xff] %v832
      %897 = vst [vmem:[#allocation7 + $0x160] sm:$0xff] %v833
      %898 = vst [vmem:[#allocation7 + $0x168] sm:$0xff] %v834
      %899 = vst [vmem:[#allocation7 + $0x170] sm:$0xff] %v835
      %900 = vst [vmem:[#allocation7 + $0x178] sm:$0xff] %v836
      %901 = vst [vmem:[#allocation7 + $0x180] sm:$0xff] %v837
      %902 = vst [vmem:[#allocation7 + $0x188] sm:$0xff] %v838
      %903 = vst [vmem:[#allocation7 + $0x190] sm:$0xff] %v839
      %904 = vst [vmem:[#allocation7 + $0x198] sm:$0xff] %v840
      %905 = vst [vmem:[#allocation7 + $0x1a0] sm:$0xff] %v841
      %906 = vst [vmem:[#allocation7 + $0x1a8] sm:$0xff] %v842
      %907 = vst [vmem:[#allocation7 + $0x1b0] sm:$0xff] %v843
      %908 = vst [vmem:[#allocation7 + $0x1b8] sm:$0xff] %v844
      %909 = vst [vmem:[#allocation7 + $0x1c0] sm:$0xff] %v845
      %910 = vst [vmem:[#allocation7 + $0x1c8] sm:$0xff] %v846
      %911 = vst [vmem:[#allocation7 + $0x1d0] sm:$0xff] %v847
      %912 = vst [vmem:[#allocation7 + $0x1d8] sm:$0xff] %v848
      %913 = vst [vmem:[#allocation7 + $0x1e0] sm:$0xff] %v849
      %914 = vst [vmem:[#allocation7 + $0x1e8] sm:$0xff] %v850
      %915 = vst [vmem:[#allocation7 + $0x1f0] sm:$0xff] %v851
      %916 = vst [vmem:[#allocation7 + $0x1f8] sm:$0xff] %v852
    $region25: #{tpu_custom_call.1} parent=1 // pred_fallthru
      _
    // Predicated region
    $region26: #{tpu_custom_call.1} parent=1 // pred_check
      %p917 = pneg %p653
    $region27: #{tpu_custom_call.1} parent=1 // pred_check_branch
      %919 = sbr.rel (%p917) target = $region29
    $region28: #{tpu_custom_call.1} parent=1 // pred_region
      %v920 = vld [vmem:[#allocation7] sm:$0xff]
      %v921 = vld [vmem:[#allocation7 + $0x8] sm:$0xff]
      %v922 = vld [vmem:[#allocation7 + $0x10] sm:$0xff]
      %v923 = vld [vmem:[#allocation7 + $0x18] sm:$0xff]
      %v924 = vld [vmem:[#allocation7 + $0x20] sm:$0xff]
      %v925 = vld [vmem:[#allocation7 + $0x28] sm:$0xff]
      %v926 = vld [vmem:[#allocation7 + $0x30] sm:$0xff]
      %v927 = vld [vmem:[#allocation7 + $0x38] sm:$0xff]
      %v928 = vld [vmem:[#allocation7 + $0x40] sm:$0xff]
      %v929 = vld [vmem:[#allocation7 + $0x48] sm:$0xff]
      %v930 = vld [vmem:[#allocation7 + $0x50] sm:$0xff]
      %v931 = vld [vmem:[#allocation7 + $0x58] sm:$0xff]
      %v932 = vld [vmem:[#allocation7 + $0x60] sm:$0xff]
      %v933 = vld [vmem:[#allocation7 + $0x68] sm:$0xff]
      %v934 = vld [vmem:[#allocation7 + $0x70] sm:$0xff]
      %v935 = vld [vmem:[#allocation7 + $0x78] sm:$0xff]
      %v936 = vld [vmem:[#allocation7 + $0x80] sm:$0xff]
      %v937 = vld [vmem:[#allocation7 + $0x88] sm:$0xff]
      %v938 = vld [vmem:[#allocation7 + $0x90] sm:$0xff]
      %v939 = vld [vmem:[#allocation7 + $0x98] sm:$0xff]
      %v940 = vld [vmem:[#allocation7 + $0xa0] sm:$0xff]
      %v941 = vld [vmem:[#allocation7 + $0xa8] sm:$0xff]
      %v942 = vld [vmem:[#allocation7 + $0xb0] sm:$0xff]
      %v943 = vld [vmem:[#allocation7 + $0xb8] sm:$0xff]
      %v944 = vld [vmem:[#allocation7 + $0xc0] sm:$0xff]
      %v945 = vld [vmem:[#allocation7 + $0xc8] sm:$0xff]
      %v946 = vld [vmem:[#allocation7 + $0xd0] sm:$0xff]
      %v947 = vld [vmem:[#allocation7 + $0xd8] sm:$0xff]
      %v948 = vld [vmem:[#allocation7 + $0xe0] sm:$0xff]
      %v949 = vld [vmem:[#allocation7 + $0xe8] sm:$0xff]
      %v950 = vld [vmem:[#allocation7 + $0xf0] sm:$0xff]
      %v951 = vld [vmem:[#allocation7 + $0xf8] sm:$0xff]
      %v952 = vld [vmem:[#allocation7 + $0x100] sm:$0xff]
      %v953 = vld [vmem:[#allocation7 + $0x108] sm:$0xff]
      %v954 = vld [vmem:[#allocation7 + $0x110] sm:$0xff]
      %v955 = vld [vmem:[#allocation7 + $0x118] sm:$0xff]
      %v956 = vld [vmem:[#allocation7 + $0x120] sm:$0xff]
      %v957 = vld [vmem:[#allocation7 + $0x128] sm:$0xff]
      %v958 = vld [vmem:[#allocation7 + $0x130] sm:$0xff]
      %v959 = vld [vmem:[#allocation7 + $0x138] sm:$0xff]
      %v960 = vld [vmem:[#allocation7 + $0x140] sm:$0xff]
      %v961 = vld [vmem:[#allocation7 + $0x148] sm:$0xff]
      %v962 = vld [vmem:[#allocation7 + $0x150] sm:$0xff]
      %v963 = vld [vmem:[#allocation7 + $0x158] sm:$0xff]
      %v964 = vld [vmem:[#allocation7 + $0x160] sm:$0xff]
      %v965 = vld [vmem:[#allocation7 + $0x168] sm:$0xff]
      %v966 = vld [vmem:[#allocation7 + $0x170] sm:$0xff]
      %v967 = vld [vmem:[#allocation7 + $0x178] sm:$0xff]
      %v968 = vld [vmem:[#allocation7 + $0x180] sm:$0xff]
      %v969 = vld [vmem:[#allocation7 + $0x188] sm:$0xff]
      %v970 = vld [vmem:[#allocation7 + $0x190] sm:$0xff]
      %v971 = vld [vmem:[#allocation7 + $0x198] sm:$0xff]
      %v972 = vld [vmem:[#allocation7 + $0x1a0] sm:$0xff]
      %v973 = vld [vmem:[#allocation7 + $0x1a8] sm:$0xff]
      %v974 = vld [vmem:[#allocation7 + $0x1b0] sm:$0xff]
      %v975 = vld [vmem:[#allocation7 + $0x1b8] sm:$0xff]
      %v976 = vld [vmem:[#allocation7 + $0x1c0] sm:$0xff]
      %v977 = vld [vmem:[#allocation7 + $0x1c8] sm:$0xff]
      %v978 = vld [vmem:[#allocation7 + $0x1d0] sm:$0xff]
      %v979 = vld [vmem:[#allocation7 + $0x1d8] sm:$0xff]
      %v980 = vld [vmem:[#allocation7 + $0x1e0] sm:$0xff]
      %v981 = vld [vmem:[#allocation7 + $0x1e8] sm:$0xff]
      %v982 = vld [vmem:[#allocation7 + $0x1f0] sm:$0xff]
      %v983 = vld [vmem:[#allocation7 + $0x1f8] sm:$0xff]
      %v984 = vadd.f32 %v920, %v921
      %v985 = vadd.f32 %v984, %v922
      %v986 = vadd.f32 %v985, %v923
      %v987 = vadd.f32 %v986, %v924
      %v988 = vadd.f32 %v987, %v925
      %v989 = vadd.f32 %v988, %v926
      %v990 = vadd.f32 %v989, %v927
      %v991 = vadd.f32 %v990, %v928
      %v992 = vadd.f32 %v991, %v929
      %v993 = vadd.f32 %v992, %v930
      %v994 = vadd.f32 %v993, %v931
      %v995 = vadd.f32 %v994, %v932
      %v996 = vadd.f32 %v995, %v933
      %v997 = vadd.f32 %v996, %v934
      %v998 = vadd.f32 %v997, %v935
      %v999 = vadd.f32 %v998, %v936
      %v1000 = vadd.f32 %v999, %v937
      %v1001 = vadd.f32 %v1000, %v938
      %v1002 = vadd.f32 %v1001, %v939
      %v1003 = vadd.f32 %v1002, %v940
      %v1004 = vadd.f32 %v1003, %v941
      %v1005 = vadd.f32 %v1004, %v942
      %v1006 = vadd.f32 %v1005, %v943
      %v1007 = vadd.f32 %v1006, %v944
      %v1008 = vadd.f32 %v1007, %v945
      %v1009 = vadd.f32 %v1008, %v946
      %v1010 = vadd.f32 %v1009, %v947
      %v1011 = vadd.f32 %v1010, %v948
      %v1012 = vadd.f32 %v1011, %v949
      %v1013 = vadd.f32 %v1012, %v950
      %v1014 = vadd.f32 %v1013, %v951
      %v1015 = vadd.f32 %v1014, %v952
      %v1016 = vadd.f32 %v1015, %v953
      %v1017 = vadd.f32 %v1016, %v954
      %v1018 = vadd.f32 %v1017, %v955
      %v1019 = vadd.f32 %v1018, %v956
      %v1020 = vadd.f32 %v1019, %v957
      %v1021 = vadd.f32 %v1020, %v958
      %v1022 = vadd.f32 %v1021, %v959
      %v1023 = vadd.f32 %v1022, %v960
      %v1024 = vadd.f32 %v1023, %v961
      %v1025 = vadd.f32 %v1024, %v962
      %v1026 = vadd.f32 %v1025, %v963
      %v1027 = vadd.f32 %v1026, %v964
      %v1028 = vadd.f32 %v1027, %v965
      %v1029 = vadd.f32 %v1028, %v966
      %v1030 = vadd.f32 %v1029, %v967
      %v1031 = vadd.f32 %v1030, %v968
      %v1032 = vadd.f32 %v1031, %v969
      %v1033 = vadd.f32 %v1032, %v970
      %v1034 = vadd.f32 %v1033, %v971
      %v1035 = vadd.f32 %v1034, %v972
      %v1036 = vadd.f32 %v1035, %v973
      %v1037 = vadd.f32 %v1036, %v974
      %v1038 = vadd.f32 %v1037, %v975
      %v1039 = vadd.f32 %v1038, %v976
      %v1040 = vadd.f32 %v1039, %v977
      %v1041 = vadd.f32 %v1040, %v978
      %v1042 = vadd.f32 %v1041, %v979
      %v1043 = vadd.f32 %v1042, %v980
      %v1044 = vadd.f32 %v1043, %v981
      %v1045 = vadd.f32 %v1044, %v982
      %v1046 = vadd.f32 %v1045, %v983
      %v1047 = vrot.slane %v1046, 4
      %v1048 = vadd.f32 %v1046, %v1047
      %v1049 = vrot.slane %v1048, 2
      %v1050 = vadd.f32 %v1048, %v1049
      %v1051 = vrot.slane %v1050, 1
      %v1052 = vadd.f32 %v1050, %v1051
      %v1053 = vmul.f32 %v920, %v920
      %v1054 = vmul.f32 %v921, %v921
      %v1055 = vmul.f32 %v922, %v922
      %v1056 = vmul.f32 %v923, %v923
      %v1057 = vmul.f32 %v924, %v924
      %v1058 = vmul.f32 %v925, %v925
      %v1059 = vmul.f32 %v926, %v926
      %v1060 = vmul.f32 %v927, %v927
      %v1061 = vmul.f32 %v928, %v928
      %v1062 = vmul.f32 %v929, %v929
      %v1063 = vmul.f32 %v930, %v930
      %v1064 = vmul.f32 %v931, %v931
      %v1065 = vmul.f32 %v932, %v932
      %v1066 = vmul.f32 %v933, %v933
      %v1067 = vmul.f32 %v934, %v934
      %v1068 = vmul.f32 %v935, %v935
      %v1069 = vmul.f32 %v936, %v936
      %v1070 = vmul.f32 %v937, %v937
      %v1071 = vmul.f32 %v938, %v938
      %v1072 = vmul.f32 %v939, %v939
      %v1073 = vmul.f32 %v940, %v940
      %v1074 = vmul.f32 %v941, %v941
      %v1075 = vmul.f32 %v942, %v942
      %v1076 = vmul.f32 %v943, %v943
      %v1077 = vmul.f32 %v944, %v944
      %v1078 = vmul.f32 %v945, %v945
      %v1079 = vmul.f32 %v946, %v946
      %v1080 = vmul.f32 %v947, %v947
      %v1081 = vmul.f32 %v948, %v948
      %v1082 = vmul.f32 %v949, %v949
      %v1083 = vmul.f32 %v950, %v950
      %v1084 = vmul.f32 %v951, %v951
      %v1085 = vmul.f32 %v952, %v952
      %v1086 = vmul.f32 %v953, %v953
      %v1087 = vmul.f32 %v954, %v954
      %v1088 = vmul.f32 %v955, %v955
      %v1089 = vmul.f32 %v956, %v956
      %v1090 = vmul.f32 %v957, %v957
      %v1091 = vmul.f32 %v958, %v958
      %v1092 = vmul.f32 %v959, %v959
      %v1093 = vmul.f32 %v960, %v960
      %v1094 = vmul.f32 %v961, %v961
      %v1095 = vmul.f32 %v962, %v962
      %v1096 = vmul.f32 %v963, %v963
      %v1097 = vmul.f32 %v964, %v964
      %v1098 = vmul.f32 %v965, %v965
      %v1099 = vmul.f32 %v966, %v966
      %v1100 = vmul.f32 %v967, %v967
      %v1101 = vmul.f32 %v968, %v968
      %v1102 = vmul.f32 %v969, %v969
      %v1103 = vmul.f32 %v970, %v970
      %v1104 = vmul.f32 %v971, %v971
      %v1105 = vmul.f32 %v972, %v972
      %v1106 = vmul.f32 %v973, %v973
      %v1107 = vmul.f32 %v974, %v974
      %v1108 = vmul.f32 %v975, %v975
      %v1109 = vmul.f32 %v976, %v976
      %v1110 = vmul.f32 %v977, %v977
      %v1111 = vmul.f32 %v978, %v978
      %v1112 = vmul.f32 %v979, %v979
      %v1113 = vmul.f32 %v980, %v980
      %v1114 = vmul.f32 %v981, %v981
      %v1115 = vmul.f32 %v982, %v982
      %v1116 = vmul.f32 %v983, %v983
      %v1117 = vadd.f32 %v1053, %v1054
      %v1118 = vadd.f32 %v1117, %v1055
      %v1119 = vadd.f32 %v1118, %v1056
      %v1120 = vadd.f32 %v1119, %v1057
      %v1121 = vadd.f32 %v1120, %v1058
      %v1122 = vadd.f32 %v1121, %v1059
      %v1123 = vadd.f32 %v1122, %v1060
      %v1124 = vadd.f32 %v1123, %v1061
      %v1125 = vadd.f32 %v1124, %v1062
      %v1126 = vadd.f32 %v1125, %v1063
      %v1127 = vadd.f32 %v1126, %v1064
      %v1128 = vadd.f32 %v1127, %v1065
      %v1129 = vadd.f32 %v1128, %v1066
      %v1130 = vadd.f32 %v1129, %v1067
      %v1131 = vadd.f32 %v1130, %v1068
      %v1132 = vadd.f32 %v1131, %v1069
      %v1133 = vadd.f32 %v1132, %v1070
      %v1134 = vadd.f32 %v1133, %v1071
      %v1135 = vadd.f32 %v1134, %v1072
      %v1136 = vadd.f32 %v1135, %v1073
      %v1137 = vadd.f32 %v1136, %v1074
      %v1138 = vadd.f32 %v1137, %v1075
      %v1139 = vadd.f32 %v1138, %v1076
      %v1140 = vadd.f32 %v1139, %v1077
      %v1141 = vadd.f32 %v1140, %v1078
      %v1142 = vadd.f32 %v1141, %v1079
      %v1143 = vadd.f32 %v1142, %v1080
      %v1144 = vadd.f32 %v1143, %v1081
      %v1145 = vadd.f32 %v1144, %v1082
      %v1146 = vadd.f32 %v1145, %v1083
      %v1147 = vadd.f32 %v1146, %v1084
      %v1148 = vadd.f32 %v1147, %v1085
      %v1149 = vadd.f32 %v1148, %v1086
      %v1150 = vadd.f32 %v1149, %v1087
      %v1151 = vadd.f32 %v1150, %v1088
      %v1152 = vadd.f32 %v1151, %v1089
      %v1153 = vadd.f32 %v1152, %v1090
      %v1154 = vadd.f32 %v1153, %v1091
      %v1155 = vadd.f32 %v1154, %v1092
      %v1156 = vadd.f32 %v1155, %v1093
      %v1157 = vadd.f32 %v1156, %v1094
      %v1158 = vadd.f32 %v1157, %v1095
      %v1159 = vadd.f32 %v1158, %v1096
      %v1160 = vadd.f32 %v1159, %v1097
      %v1161 = vadd.f32 %v1160, %v1098
      %v1162 = vadd.f32 %v1161, %v1099
      %v1163 = vadd.f32 %v1162, %v1100
      %v1164 = vadd.f32 %v1163, %v1101
      %v1165 = vadd.f32 %v1164, %v1102
      %v1166 = vadd.f32 %v1165, %v1103
      %v1167 = vadd.f32 %v1166, %v1104
      %v1168 = vadd.f32 %v1167, %v1105
      %v1169 = vadd.f32 %v1168, %v1106
      %v1170 = vadd.f32 %v1169, %v1107
      %v1171 = vadd.f32 %v1170, %v1108
      %v1172 = vadd.f32 %v1171, %v1109
      %v1173 = vadd.f32 %v1172, %v1110
      %v1174 = vadd.f32 %v1173, %v1111
      %v1175 = vadd.f32 %v1174, %v1112
      %v1176 = vadd.f32 %v1175, %v1113
      %v1177 = vadd.f32 %v1176, %v1114
      %v1178 = vadd.f32 %v1177, %v1115
      %v1179 = vadd.f32 %v1178, %v1116
      %v1180 = vrot.slane %v1179, 4
      %v1181 = vadd.f32 %v1179, %v1180
      %v1182 = vrot.slane %v1181, 2
      %v1183 = vadd.f32 %v1181, %v1182
      %v1184 = vrot.slane %v1183, 1
      %v1185 = vadd.f32 %v1183, %v1184
      %vm1186 = vcmask 1040384
      %v1187 = vsel %vm1186, %v1052, %v1185
      %vm1188 = vcmask 1041408
      %v1189 = vsel %vm1188, %v1187, 0.0
      %1190 = vst [vmem:[#allocation8] sm:$0xff] %v1189
    $region29: #{tpu_custom_call.1} parent=1 // pred_fallthru
      _
    // Predicated region
    $region30: #{tpu_custom_call.1} parent=1 // pred_check
      _
    $region31: #{tpu_custom_call.1} parent=1 // pred_check_branch
      %1192 = sbr.rel (0) target = $region33
    $region32: #{tpu_custom_call.1} parent=1 // pred_region
      %s1194 = ssub.s32 8192, 8192
      %1195 = vsyncadd [#allocation4], %s1194
      %s1196 = sshll.u32 [#allocation7], 4
      %s1197 = int_to_ptr.vmem [resolvable:$true] %s1196
      %1202 = dma.vmem_to_hbm [thread:$0]  %s1197, 8192, %s2, [#allocation4], 128, 128, 8
    $region33: #{tpu_custom_call.1} parent=1 // pred_fallthru
      _
    // Predicated region
    $region34: #{tpu_custom_call.1} parent=1 // pred_check
      _
    $region35: #{tpu_custom_call.1} parent=1 // pred_check_branch
      %1204 = sbr.rel (0) target = $region37
    $region36: #{tpu_custom_call.1} parent=1 // pred_region
      %s1206 = ssub.s32 128, 128
      %1207 = vsyncadd [#allocation9], %s1206
      %s1209 = sshll.u32 [#allocation8], 4
      %s1210 = int_to_ptr.vmem [resolvable:$true] %s1209
      %1212 = dma.vmem_to_hbm [thread:$0]  %s1210, 128, %s3, [#allocation9]
    $region37: #{tpu_custom_call.1} parent=1 // pred_fallthru
      _
    // Predicated region
    $region38: #{tpu_custom_call.1} parent=1 // pred_check
      _
    $region39: #{tpu_custom_call.1} parent=1 // pred_check_branch
      %1214 = sbr.rel (0) target = $region41
    $region40: #{tpu_custom_call.1} parent=1 // pred_region
      %1215 = dma.done [#allocation4], 8192
    $region41: #{tpu_custom_call.1} parent=1 // pred_fallthru
      _
    // Predicated region
    $region42: #{tpu_custom_call.1} parent=1 // pred_check
      _
    $region43: #{tpu_custom_call.1} parent=1 // pred_check_branch
      %1217 = sbr.rel (0) target = $region45
    $region44: #{tpu_custom_call.1} parent=1 // pred_region
      %1218 = dma.done [#allocation9], 128
    $region45: #{tpu_custom_call.1} parent=1 // pred_fallthru
      _
    %1219 = vsyncpa [#allocation3], 1
    %1220 = vsyncpa [#allocation6], 1
    %1221 = vsyncpa [#allocation4], 1
    %1222 = vsyncpa [#allocation9], 1

</llo_original>
